<compile_context>
chip_gen: v5e
topology: v5e:2x2
jax: 0.10.0
libtpu: 0.0.40
codegen_flags: <defaults>
</compile_context>

<pallas_src>
import functools

import jax
import jax.numpy as jnp
from jax import lax
from jax.experimental import pallas as pl
from jax.experimental.pallas import tpu as pltpu


# ----------------------------------------------------------------------------
# Fused Pallas kernel: per-channel piece extraction + permutation + reassembly.
# ----------------------------------------------------------------------------
def _make_puzzle_kernel(rows: int, cols: int, ph: int, pw: int):
    P = rows * cols

    def kernel(idx_ref, x_ref, out_ref, piece_buf):
        # idx_ref   : (P,) int32 in SMEM — row-major source piece per dest slot
        # x_ref     : (1, H, W) VMEM slab (one channel per grid step)
        # out_ref   : (1, H, W) VMEM slab
        # piece_buf : (P, ph, pw) VMEM scratch
        x_ch = x_ref[0]

        # Initialize the output slab with the input slab: the remainder
        # rows/cols (PyTorch `buffer` path) are preserved with zero extra HBM
        # traffic; the puzzled windows are overwritten below.
        out_ref[0] = x_ch

        # Phase A: stage every piece (row-major source order, static windows).
        # TODO(synk): for very large piece grids (>= 8x8) this static unroll
        # should become a loop; it is unrolled because window offsets must be
        # static for the vector slices.
        for k in range(P):
            si, sj = k // cols, k % cols
            piece_buf[k] = x_ch[si * ph:(si + 1) * ph, sj * pw:(sj + 1) * pw]

        # Phase B: scatter permuted pieces; the only dynamic index is on the
        # leading (piece) axis of the VMEM scratch.
        for m in range(P):
            r, c = m // cols, m % cols
            out_ref[0, r * ph:(r + 1) * ph, c * pw:(c + 1) * pw] = (
                piece_buf[idx_ref[m]])

    return kernel


def puzzle_pallas(x: jax.Array, src_idx: jax.Array, pieces: tuple) -> jax.Array:
    """Fused puzzle: out channel-by-channel, src_idx[m] = row-major source piece."""
    C, H, W = x.shape
    rows, cols = pieces
    ph, pw = H // rows, W // cols
    P = rows * cols
    bytes_accessed = int(2 * x.size * jnp.dtype(x.dtype).itemsize)  # 1 read + 1 write
    return pl.pallas_call(
        _make_puzzle_kernel(rows, cols, ph, pw),
        out_shape=jax.ShapeDtypeStruct((C, H, W), x.dtype),
        grid_spec=pltpu.PrefetchScalarGridSpec(
            num_scalar_prefetch=1,                       # src_idx -> SMEM
            grid=(C,),
            in_specs=[pl.BlockSpec((1, H, W), lambda c, idx: (c, 0, 0))],
            out_specs=pl.BlockSpec((1, H, W), lambda c, idx: (c, 0, 0)),
            scratch_shapes=[pltpu.VMEM((P, ph, pw), x.dtype)],
        ),
        compiler_params=pltpu.CompilerParams(
            # Independent channels: lets v7x shard the grid across both TCs.
            dimension_semantics=("parallel",),
        ),
        cost_estimate=pl.CostEstimate(
            flops=0, transcendentals=0, bytes_accessed=bytes_accessed),
    )(src_idx.astype(jnp.int32), x)


# ----------------------------------------------------------------------------
# Puzzle2d forward (deterministic core + probability-gated wrapper).
# ----------------------------------------------------------------------------
def puzzle_apply(x: jax.Array, perm: jax.Array, pieces: tuple) -> jax.Array:
    """Apply the puzzle permutation `perm` (PyTorch randperm semantics)."""
    rows, cols = pieces
    # PyTorch builds the piece list column-major (k = j*rows + i) and
    # reassembles row-major: destination slot m receives original piece
    # perm[m] (column-major index).  Convert to a row-major source index.
    src_i = perm % rows
    src_j = perm // rows
    src_flat = (src_i * cols + src_j).astype(jnp.int32)
    return puzzle_pallas(x, src_flat, pieces)


def puzzle2d(x: jax.Array, key: jax.Array, probability: float = 1.0,
             pieces: tuple = (3, 3)) -> jax.Array:
    """JAX/Pallas port of Puzzle2d.forward for a 3-D CHW input."""
    rows, cols = pieces
    k_apply, k_perm = jax.random.split(key)
    apply_tf = probability > jax.random.uniform(k_apply, ())
    perm = jax.random.permutation(k_perm, rows * cols)
    # lax.cond: skip all work (including the kernel) when the gate is false.
    return lax.cond(apply_tf,
                    lambda t: puzzle_apply(t, perm, pieces),
                    lambda t: t,
                    x)


# ----------------------------------------------------------------------------
# Pure-JAX reference: faithful port of the PyTorch loops (for verification).
# ----------------------------------------------------------------------------
def puzzle_reference(x: jax.Array, perm: jax.Array, pieces: tuple) -> jax.Array:
    C, H, W = x.shape
    rows, cols = pieces
    ph, pw = H // rows, W // cols
    # column-major extraction, exactly like the torch list comprehension
    data = [x[:, i * ph:(i + 1) * ph, j * pw:(j + 1) * pw]
            for j in range(cols) for i in range(rows)]
    data = jnp.stack(data)[perm]
    region = jnp.concatenate(
        [jnp.concatenate([data[r * cols + c] for c in range(cols)], axis=-1)
         for r in range(rows)],
        axis=-2)
    rest_h, rest_w = H % rows, W % cols
    if rest_h == 0 and rest_w == 0:
        return region
    return x.at[:, : H - rest_h, : W - rest_w].set(region)


if __name__ == "__main__":
    root = jax.random.PRNGKey(0)
    k_x, k_fwd, k_x2 = jax.random.split(root, 3)

    # 3-D CHW input consistent with the module: (C, H, W) = (4, 16, 16),
    # pieces=(3,3) -> 5x5 pieces with a 1-pixel remainder row/column.
    x = jax.random.normal(k_x, (4, 16, 16), dtype=jnp.float32)

    fwd = jax.jit(functools.partial(puzzle2d, probability=1.0, pieces=(3, 3)))
    out = jax.block_until_ready(fwd(x, k_fwd))

    # sanity: shape preserved, remainder edge untouched, pure rearrangement
    assert out.shape == x.shape
    assert bool(jnp.allclose(out[:, 15:, :], x[:, 15:, :]))
    assert bool(jnp.allclose(out[:, :, 15:], x[:, :, 15:]))
    assert bool(jnp.allclose(jnp.sort(out.ravel()), jnp.sort(x.ravel())))

    # end-to-end check against the faithful PyTorch-loop port, using the same
    # permutation the forward pass drew from its key
    _, k_perm_used = jax.random.split(k_fwd)
    perm_used = jax.random.permutation(k_perm_used, 9)
    assert bool(jnp.allclose(out, puzzle_reference(x, perm_used, (3, 3))))

    # mapping check with rows != cols and a non-divisible shape
    x2 = jax.random.normal(k_x2, (4, 17, 20), dtype=jnp.float32)
    for pcs in [(2, 3), (3, 2), (3, 3)]:
        P = pcs[0] * pcs[1]
        for seed in range(3):
            perm = jax.random.permutation(jax.random.PRNGKey(seed + 1), P)
            got = puzzle_apply(x2, perm, pcs)
            want = puzzle_reference(x2, perm, pcs)
            assert bool(jnp.allclose(got, want)), (pcs, seed)

    print("KERNEL_OK")
</pallas_src>

<mosaic_0001>
module attributes {stable_mosaic.version = 11 : i64} {
  func.func @kernel(%arg0: i32, %arg1: memref<9xi32, #tpu.memory_space<smem>>, %arg2: memref<1x16x16xf32, #tpu.memory_space<vmem>>, %arg3: memref<1x16x16xf32, #tpu.memory_space<vmem>>, %arg4: memref<9x5x5xf32, #tpu.memory_space<vmem>>) attributes {dimension_semantics = [#tpu.dimension_semantics<parallel>], iteration_bounds = array<i64: 4>, scalar_prefetch = 1 : i64, scratch_operands = 1 : i64, tpu.core_type = #tpu.core_type<tc>, window_params = [{transform_indices = @transform_0, window_bounds = array<i64: 1, 16, 16>}, {transform_indices = @transform_1, window_bounds = array<i64: 1, 16, 16>}]} {
    %c0 = arith.constant 0 : index
    %c0_0 = arith.constant 0 : index
    %c0_1 = arith.constant 0 : index
    %0 = vector.load %arg2[%c0, %c0_0, %c0_1] : memref<1x16x16xf32, #tpu.memory_space<vmem>>, vector<1x16x16xf32>
    %1 = vector.shape_cast %0 : vector<1x16x16xf32> to vector<16x16xf32>
    %c0_2 = arith.constant 0 : index
    %c0_3 = arith.constant 0 : index
    %c0_4 = arith.constant 0 : index
    %2 = vector.load %arg3[%c0_2, %c0_3, %c0_4] : memref<1x16x16xf32, #tpu.memory_space<vmem>>, vector<1x16x16xf32>
    %3 = vector.shape_cast %2 : vector<1x16x16xf32> to vector<16x16xf32>
    %4 = vector.shape_cast %1 : vector<16x16xf32> to vector<1x16x16xf32>
    tpu.vector_store %arg3[%c0_2, %c0_3, %c0_4], %4 {strides = array<i32>} : memref<1x16x16xf32, #tpu.memory_space<vmem>>, vector<1x16x16xf32>,
    %5 = vector.extract_strided_slice %1 {offsets = [0, 0], sizes = [5, 5], strides = [1, 1]} : vector<16x16xf32> to vector<5x5xf32>
    %c0_5 = arith.constant 0 : index
    %c0_6 = arith.constant 0 : index
    %c0_7 = arith.constant 0 : index
    %6 = vector.load %arg4[%c0_5, %c0_6, %c0_7] : memref<9x5x5xf32, #tpu.memory_space<vmem>>, vector<1x5x5xf32>
    %7 = vector.shape_cast %6 : vector<1x5x5xf32> to vector<5x5xf32>
    %8 = vector.shape_cast %5 : vector<5x5xf32> to vector<1x5x5xf32>
    tpu.vector_store %arg4[%c0_5, %c0_6, %c0_7], %8 {strides = array<i32>} : memref<9x5x5xf32, #tpu.memory_space<vmem>>, vector<1x5x5xf32>,
    %9 = vector.extract_strided_slice %1 {offsets = [0, 5], sizes = [5, 5], strides = [1, 1]} : vector<16x16xf32> to vector<5x5xf32>
    %c1 = arith.constant 1 : index
    %c0_8 = arith.constant 0 : index
    %c0_9 = arith.constant 0 : index
    %10 = vector.load %arg4[%c1, %c0_8, %c0_9] : memref<9x5x5xf32, #tpu.memory_space<vmem>>, vector<1x5x5xf32>
    %11 = vector.shape_cast %10 : vector<1x5x5xf32> to vector<5x5xf32>
    %12 = vector.shape_cast %9 : vector<5x5xf32> to vector<1x5x5xf32>
    tpu.vector_store %arg4[%c1, %c0_8, %c0_9], %12 {strides = array<i32>} : memref<9x5x5xf32, #tpu.memory_space<vmem>>, vector<1x5x5xf32>,
    %13 = vector.extract_strided_slice %1 {offsets = [0, 10], sizes = [5, 5], strides = [1, 1]} : vector<16x16xf32> to vector<5x5xf32>
    %c2 = arith.constant 2 : index
    %c0_10 = arith.constant 0 : index
    %c0_11 = arith.constant 0 : index
    %14 = vector.load %arg4[%c2, %c0_10, %c0_11] : memref<9x5x5xf32, #tpu.memory_space<vmem>>, vector<1x5x5xf32>
    %15 = vector.shape_cast %14 : vector<1x5x5xf32> to vector<5x5xf32>
    %16 = vector.shape_cast %13 : vector<5x5xf32> to vector<1x5x5xf32>
    tpu.vector_store %arg4[%c2, %c0_10, %c0_11], %16 {strides = array<i32>} : memref<9x5x5xf32, #tpu.memory_space<vmem>>, vector<1x5x5xf32>,
    %17 = vector.extract_strided_slice %1 {offsets = [5, 0], sizes = [5, 5], strides = [1, 1]} : vector<16x16xf32> to vector<5x5xf32>
    %c3 = arith.constant 3 : index
    %c0_12 = arith.constant 0 : index
    %c0_13 = arith.constant 0 : index
    %18 = vector.load %arg4[%c3, %c0_12, %c0_13] : memref<9x5x5xf32, #tpu.memory_space<vmem>>, vector<1x5x5xf32>
    %19 = vector.shape_cast %18 : vector<1x5x5xf32> to vector<5x5xf32>
    %20 = vector.shape_cast %17 : vector<5x5xf32> to vector<1x5x5xf32>
    tpu.vector_store %arg4[%c3, %c0_12, %c0_13], %20 {strides = array<i32>} : memref<9x5x5xf32, #tpu.memory_space<vmem>>, vector<1x5x5xf32>,
    %21 = vector.extract_strided_slice %1 {offsets = [5, 5], sizes = [5, 5], strides = [1, 1]} : vector<16x16xf32> to vector<5x5xf32>
    %c4 = arith.constant 4 : index
    %c0_14 = arith.constant 0 : index
    %c0_15 = arith.constant 0 : index
    %22 = vector.load %arg4[%c4, %c0_14, %c0_15] : memref<9x5x5xf32, #tpu.memory_space<vmem>>, vector<1x5x5xf32>
    %23 = vector.shape_cast %22 : vector<1x5x5xf32> to vector<5x5xf32>
    %24 = vector.shape_cast %21 : vector<5x5xf32> to vector<1x5x5xf32>
    tpu.vector_store %arg4[%c4, %c0_14, %c0_15], %24 {strides = array<i32>} : memref<9x5x5xf32, #tpu.memory_space<vmem>>, vector<1x5x5xf32>,
    %25 = vector.extract_strided_slice %1 {offsets = [5, 10], sizes = [5, 5], strides = [1, 1]} : vector<16x16xf32> to vector<5x5xf32>
    %c5 = arith.constant 5 : index
    %c0_16 = arith.constant 0 : index
    %c0_17 = arith.constant 0 : index
    %26 = vector.load %arg4[%c5, %c0_16, %c0_17] : memref<9x5x5xf32, #tpu.memory_space<vmem>>, vector<1x5x5xf32>
    %27 = vector.shape_cast %26 : vector<1x5x5xf32> to vector<5x5xf32>
    %28 = vector.shape_cast %25 : vector<5x5xf32> to vector<1x5x5xf32>
    tpu.vector_store %arg4[%c5, %c0_16, %c0_17], %28 {strides = array<i32>} : memref<9x5x5xf32, #tpu.memory_space<vmem>>, vector<1x5x5xf32>,
    %29 = vector.extract_strided_slice %1 {offsets = [10, 0], sizes = [5, 5], strides = [1, 1]} : vector<16x16xf32> to vector<5x5xf32>
    %c6 = arith.constant 6 : index
    %c0_18 = arith.constant 0 : index
    %c0_19 = arith.constant 0 : index
    %30 = vector.load %arg4[%c6, %c0_18, %c0_19] : memref<9x5x5xf32, #tpu.memory_space<vmem>>, vector<1x5x5xf32>
    %31 = vector.shape_cast %30 : vector<1x5x5xf32> to vector<5x5xf32>
    %32 = vector.shape_cast %29 : vector<5x5xf32> to vector<1x5x5xf32>
    tpu.vector_store %arg4[%c6, %c0_18, %c0_19], %32 {strides = array<i32>} : memref<9x5x5xf32, #tpu.memory_space<vmem>>, vector<1x5x5xf32>,
    %33 = vector.extract_strided_slice %1 {offsets = [10, 5], sizes = [5, 5], strides = [1, 1]} : vector<16x16xf32> to vector<5x5xf32>
    %c7 = arith.constant 7 : index
    %c0_20 = arith.constant 0 : index
    %c0_21 = arith.constant 0 : index
    %34 = vector.load %arg4[%c7, %c0_20, %c0_21] : memref<9x5x5xf32, #tpu.memory_space<vmem>>, vector<1x5x5xf32>
    %35 = vector.shape_cast %34 : vector<1x5x5xf32> to vector<5x5xf32>
    %36 = vector.shape_cast %33 : vector<5x5xf32> to vector<1x5x5xf32>
    tpu.vector_store %arg4[%c7, %c0_20, %c0_21], %36 {strides = array<i32>} : memref<9x5x5xf32, #tpu.memory_space<vmem>>, vector<1x5x5xf32>,
    %37 = vector.extract_strided_slice %1 {offsets = [10, 10], sizes = [5, 5], strides = [1, 1]} : vector<16x16xf32> to vector<5x5xf32>
    %c8 = arith.constant 8 : index
    %c0_22 = arith.constant 0 : index
    %c0_23 = arith.constant 0 : index
    %38 = vector.load %arg4[%c8, %c0_22, %c0_23] : memref<9x5x5xf32, #tpu.memory_space<vmem>>, vector<1x5x5xf32>
    %39 = vector.shape_cast %38 : vector<1x5x5xf32> to vector<5x5xf32>
    %40 = vector.shape_cast %37 : vector<5x5xf32> to vector<1x5x5xf32>
    tpu.vector_store %arg4[%c8, %c0_22, %c0_23], %40 {strides = array<i32>} : memref<9x5x5xf32, #tpu.memory_space<vmem>>, vector<1x5x5xf32>,
    %c0_24 = arith.constant 0 : index
    %41 = memref.load %arg1[%c0_24] : memref<9xi32, #tpu.memory_space<smem>>
    %42 = arith.index_cast %41 : i32 to index
    %c0_25 = arith.constant 0 : index
    %c0_26 = arith.constant 0 : index
    %43 = vector.load %arg4[%42, %c0_25, %c0_26] : memref<9x5x5xf32, #tpu.memory_space<vmem>>, vector<1x5x5xf32>
    %44 = vector.shape_cast %43 : vector<1x5x5xf32> to vector<5x5xf32>
    %c0_27 = arith.constant 0 : index
    %c0_28 = arith.constant 0 : index
    %c0_29 = arith.constant 0 : index
    %45 = vector.load %arg3[%c0_27, %c0_28, %c0_29] : memref<1x16x16xf32, #tpu.memory_space<vmem>>, vector<1x5x5xf32>
    %46 = vector.shape_cast %45 : vector<1x5x5xf32> to vector<5x5xf32>
    %47 = vector.shape_cast %44 : vector<5x5xf32> to vector<1x5x5xf32>
    tpu.vector_store %arg3[%c0_27, %c0_28, %c0_29], %47 {strides = array<i32>} : memref<1x16x16xf32, #tpu.memory_space<vmem>>, vector<1x5x5xf32>,
    %c1_30 = arith.constant 1 : index
    %48 = memref.load %arg1[%c1_30] : memref<9xi32, #tpu.memory_space<smem>>
    %49 = arith.index_cast %48 : i32 to index
    %c0_31 = arith.constant 0 : index
    %c0_32 = arith.constant 0 : index
    %50 = vector.load %arg4[%49, %c0_31, %c0_32] : memref<9x5x5xf32, #tpu.memory_space<vmem>>, vector<1x5x5xf32>
    %51 = vector.shape_cast %50 : vector<1x5x5xf32> to vector<5x5xf32>
    %c0_33 = arith.constant 0 : index
    %c0_34 = arith.constant 0 : index
    %c5_35 = arith.constant 5 : index
    %52 = vector.load %arg3[%c0_33, %c0_34, %c5_35] : memref<1x16x16xf32, #tpu.memory_space<vmem>>, vector<1x5x5xf32>
    %53 = vector.shape_cast %52 : vector<1x5x5xf32> to vector<5x5xf32>
    %54 = vector.shape_cast %51 : vector<5x5xf32> to vector<1x5x5xf32>
    tpu.vector_store %arg3[%c0_33, %c0_34, %c5_35], %54 {strides = array<i32>} : memref<1x16x16xf32, #tpu.memory_space<vmem>>, vector<1x5x5xf32>,
    %c2_36 = arith.constant 2 : index
    %55 = memref.load %arg1[%c2_36] : memref<9xi32, #tpu.memory_space<smem>>
    %56 = arith.index_cast %55 : i32 to index
    %c0_37 = arith.constant 0 : index
    %c0_38 = arith.constant 0 : index
    %57 = vector.load %arg4[%56, %c0_37, %c0_38] : memref<9x5x5xf32, #tpu.memory_space<vmem>>, vector<1x5x5xf32>
    %58 = vector.shape_cast %57 : vector<1x5x5xf32> to vector<5x5xf32>
    %c0_39 = arith.constant 0 : index
    %c0_40 = arith.constant 0 : index
    %c10 = arith.constant 10 : index
    %59 = vector.load %arg3[%c0_39, %c0_40, %c10] : memref<1x16x16xf32, #tpu.memory_space<vmem>>, vector<1x5x5xf32>
    %60 = vector.shape_cast %59 : vector<1x5x5xf32> to vector<5x5xf32>
    %61 = vector.shape_cast %58 : vector<5x5xf32> to vector<1x5x5xf32>
    tpu.vector_store %arg3[%c0_39, %c0_40, %c10], %61 {strides = array<i32>} : memref<1x16x16xf32, #tpu.memory_space<vmem>>, vector<1x5x5xf32>,
    %c3_41 = arith.constant 3 : index
    %62 = memref.load %arg1[%c3_41] : memref<9xi32, #tpu.memory_space<smem>>
    %63 = arith.index_cast %62 : i32 to index
    %c0_42 = arith.constant 0 : index
    %c0_43 = arith.constant 0 : index
    %64 = vector.load %arg4[%63, %c0_42, %c0_43] : memref<9x5x5xf32, #tpu.memory_space<vmem>>, vector<1x5x5xf32>
    %65 = vector.shape_cast %64 : vector<1x5x5xf32> to vector<5x5xf32>
    %c0_44 = arith.constant 0 : index
    %c5_45 = arith.constant 5 : index
    %c0_46 = arith.constant 0 : index
    %66 = vector.load %arg3[%c0_44, %c5_45, %c0_46] : memref<1x16x16xf32, #tpu.memory_space<vmem>>, vector<1x5x5xf32>
    %67 = vector.shape_cast %66 : vector<1x5x5xf32> to vector<5x5xf32>
    %68 = vector.shape_cast %65 : vector<5x5xf32> to vector<1x5x5xf32>
    tpu.vector_store %arg3[%c0_44, %c5_45, %c0_46], %68 {strides = array<i32>} : memref<1x16x16xf32, #tpu.memory_space<vmem>>, vector<1x5x5xf32>,
    %c4_47 = arith.constant 4 : index
    %69 = memref.load %arg1[%c4_47] : memref<9xi32, #tpu.memory_space<smem>>
    %70 = arith.index_cast %69 : i32 to index
    %c0_48 = arith.constant 0 : index
    %c0_49 = arith.constant 0 : index
    %71 = vector.load %arg4[%70, %c0_48, %c0_49] : memref<9x5x5xf32, #tpu.memory_space<vmem>>, vector<1x5x5xf32>
    %72 = vector.shape_cast %71 : vector<1x5x5xf32> to vector<5x5xf32>
    %c0_50 = arith.constant 0 : index
    %c5_51 = arith.constant 5 : index
    %c5_52 = arith.constant 5 : index
    %73 = vector.load %arg3[%c0_50, %c5_51, %c5_52] : memref<1x16x16xf32, #tpu.memory_space<vmem>>, vector<1x5x5xf32>
    %74 = vector.shape_cast %73 : vector<1x5x5xf32> to vector<5x5xf32>
    %75 = vector.shape_cast %72 : vector<5x5xf32> to vector<1x5x5xf32>
    tpu.vector_store %arg3[%c0_50, %c5_51, %c5_52], %75 {strides = array<i32>} : memref<1x16x16xf32, #tpu.memory_space<vmem>>, vector<1x5x5xf32>,
    %c5_53 = arith.constant 5 : index
    %76 = memref.load %arg1[%c5_53] : memref<9xi32, #tpu.memory_space<smem>>
    %77 = arith.index_cast %76 : i32 to index
    %c0_54 = arith.constant 0 : index
    %c0_55 = arith.constant 0 : index
    %78 = vector.load %arg4[%77, %c0_54, %c0_55] : memref<9x5x5xf32, #tpu.memory_space<vmem>>, vector<1x5x5xf32>
    %79 = vector.shape_cast %78 : vector<1x5x5xf32> to vector<5x5xf32>
    %c0_56 = arith.constant 0 : index
    %c5_57 = arith.constant 5 : index
    %c10_58 = arith.constant 10 : index
    %80 = vector.load %arg3[%c0_56, %c5_57, %c10_58] : memref<1x16x16xf32, #tpu.memory_space<vmem>>, vector<1x5x5xf32>
    %81 = vector.shape_cast %80 : vector<1x5x5xf32> to vector<5x5xf32>
    %82 = vector.shape_cast %79 : vector<5x5xf32> to vector<1x5x5xf32>
    tpu.vector_store %arg3[%c0_56, %c5_57, %c10_58], %82 {strides = array<i32>} : memref<1x16x16xf32, #tpu.memory_space<vmem>>, vector<1x5x5xf32>,
    %c6_59 = arith.constant 6 : index
    %83 = memref.load %arg1[%c6_59] : memref<9xi32, #tpu.memory_space<smem>>
    %84 = arith.index_cast %83 : i32 to index
    %c0_60 = arith.constant 0 : index
    %c0_61 = arith.constant 0 : index
    %85 = vector.load %arg4[%84, %c0_60, %c0_61] : memref<9x5x5xf32, #tpu.memory_space<vmem>>, vector<1x5x5xf32>
    %86 = vector.shape_cast %85 : vector<1x5x5xf32> to vector<5x5xf32>
    %c0_62 = arith.constant 0 : index
    %c10_63 = arith.constant 10 : index
    %c0_64 = arith.constant 0 : index
    %87 = vector.load %arg3[%c0_62, %c10_63, %c0_64] : memref<1x16x16xf32, #tpu.memory_space<vmem>>, vector<1x5x5xf32>
    %88 = vector.shape_cast %87 : vector<1x5x5xf32> to vector<5x5xf32>
    %89 = vector.shape_cast %86 : vector<5x5xf32> to vector<1x5x5xf32>
    tpu.vector_store %arg3[%c0_62, %c10_63, %c0_64], %89 {strides = array<i32>} : memref<1x16x16xf32, #tpu.memory_space<vmem>>, vector<1x5x5xf32>,
    %c7_65 = arith.constant 7 : index
    %90 = memref.load %arg1[%c7_65] : memref<9xi32, #tpu.memory_space<smem>>
    %91 = arith.index_cast %90 : i32 to index
    %c0_66 = arith.constant 0 : index
    %c0_67 = arith.constant 0 : index
    %92 = vector.load %arg4[%91, %c0_66, %c0_67] : memref<9x5x5xf32, #tpu.memory_space<vmem>>, vector<1x5x5xf32>
    %93 = vector.shape_cast %92 : vector<1x5x5xf32> to vector<5x5xf32>
    %c0_68 = arith.constant 0 : index
    %c10_69 = arith.constant 10 : index
    %c5_70 = arith.constant 5 : index
    %94 = vector.load %arg3[%c0_68, %c10_69, %c5_70] : memref<1x16x16xf32, #tpu.memory_space<vmem>>, vector<1x5x5xf32>
    %95 = vector.shape_cast %94 : vector<1x5x5xf32> to vector<5x5xf32>
    %96 = vector.shape_cast %93 : vector<5x5xf32> to vector<1x5x5xf32>
    tpu.vector_store %arg3[%c0_68, %c10_69, %c5_70], %96 {strides = array<i32>} : memref<1x16x16xf32, #tpu.memory_space<vmem>>, vector<1x5x5xf32>,
    %c8_71 = arith.constant 8 : index
    %97 = memref.load %arg1[%c8_71] : memref<9xi32, #tpu.memory_space<smem>>
    %98 = arith.index_cast %97 : i32 to index
    %c0_72 = arith.constant 0 : index
    %c0_73 = arith.constant 0 : index
    %99 = vector.load %arg4[%98, %c0_72, %c0_73] : memref<9x5x5xf32, #tpu.memory_space<vmem>>, vector<1x5x5xf32>
    %100 = vector.shape_cast %99 : vector<1x5x5xf32> to vector<5x5xf32>
    %c0_74 = arith.constant 0 : index
    %c10_75 = arith.constant 10 : index
    %c10_76 = arith.constant 10 : index
    %101 = vector.load %arg3[%c0_74, %c10_75, %c10_76] : memref<1x16x16xf32, #tpu.memory_space<vmem>>, vector<1x5x5xf32>
    %102 = vector.shape_cast %101 : vector<1x5x5xf32> to vector<5x5xf32>
    %103 = vector.shape_cast %100 : vector<5x5xf32> to vector<1x5x5xf32>
    tpu.vector_store %arg3[%c0_74, %c10_75, %c10_76], %103 {strides = array<i32>} : memref<1x16x16xf32, #tpu.memory_space<vmem>>, vector<1x5x5xf32>,
    return
  }
  func.func @transform_0(%arg0: i32, %arg1: memref<9xi32, #tpu.memory_space<smem>>) -> (i32, i32, i32) {
    %c0_i32 = arith.constant 0 : i32
    %c0_i32_0 = arith.constant 0 : i32
    %c0_i32_1 = arith.constant 0 : i32
    return %arg0, %c0_i32, %c0_i32_0 : i32, i32, i32
  }
  func.func @transform_1(%arg0: i32, %arg1: memref<9xi32, #tpu.memory_space<smem>>) -> (i32, i32, i32) {
    %c0_i32 = arith.constant 0 : i32
    %c0_i32_0 = arith.constant 0 : i32
    %c0_i32_1 = arith.constant 0 : i32
    return %arg0, %c0_i32, %c0_i32_0 : i32, i32, i32
  }
}

</mosaic_0001>

<llo_original>
// kernel: branch_1_fun.1
$region0: #{branch_1_fun.1}
  #allocation0 [shape = 'u32[]', space=smem, size = 0x4, offset = 0x4, fixed_abs, tag = 'smem constant byte address 0x4 - core index']
  #allocation1 [shape = 'u32[72,128]{1,0:T(1,128)}', space=vmem, size = 0x9000, scoped, tag = 'internal scratch']
  #allocation2 [shape = 'f32[9,5,5]{2,1,0:T(8,128)}', space=vmem, size = 0x9000, scoped, tag = 'scratch operand']
  #allocation3 [shape = 's32[1]{0}', space=sflag, size = 0x4, scoped, tag = 'scoped memory for branch_1_fun.1']
  #allocation4 [shape = 'u8[512]{0}', space=smem, size = 0x200, scoped, tag = 'prefetched SMEM operand 0']
  %s0 = inlined_call_operand.vmem [shape: s32[9], index: 0, kind: input, shape index: {}]
  %s1 = inlined_call_operand.vmem [shape: f32[4,16,16], index: 1, kind: input, shape index: {}]
  %s2 = inlined_call_operand.hbm [shape: f32[4,16,16], index: 2, kind: output, shape index: {}]
  %s3 = sld [smem:[#allocation0]]
  $region37: #{branch_1_fun.1} parent=0
    _
  %s5 = ssub.s32 1, %s3
  %s6 = scalar_select 0, %s5, %s3
  %s8 = sshll.u32 %s0, 4
  %s9 = int_to_ptr.vmem [resolvable:$true] %s8
  %11 = dma.vmem_to_smem %s9, 16, [#allocation4], [#allocation3]
  %13 = dma.done [#allocation3], 16
  %14 = sfence
  $region1: #{branch_1_fun.1} parent=0
    #allocation5 [shape = 'u8[16384]{0}', space=vmem, size = 0x4000, scoped, tag = 'output window, operand 0']
    #allocation6 [shape = 's32[2]{0}', space=sflag, size = 0x8, scoped, tag = 'scoped memory for branch_1_fun.1']
    %15 = vsyncpa [#allocation6], 0
    %s16 = scalar_lea.sflag [#allocation6], 1
    %17 = vsyncpa %s16, 0
    loop: start=0, step=1, limit=6
    $region2: #{branch_1_fun.1} parent=1 // loop_pre_header
      _
    $region3: #{branch_1_fun.1} parent=1 // loop_header
      %s19 = sphi 0, %s23
      %p20 = scmp.ge.s32.totalorder %s19, 6
      %s29 = sphi 0, %s31
      %s32 = sphi 0, %s29
      %s33 = sphi 0, %s32
      %s49 = sphi 0, %s33
      %s55 = sphi 0, %s57
      %s58 = sphi 0, %s55
      %s59 = sphi 0, %s58
      %s75 = sphi 0, %s59
    $region4: #{branch_1_fun.1} parent=1 // loop_header_branch
      %22 = sbr.rel (%p20) target = $region8
    $region5: #{branch_1_fun.1} parent=1 // loop_body
      %s24 = ssub.s32 %s19, 1
      %s25 = ssub.s32 %s19, 2
      %s26 = sadd.s32 %s19, 1
      %s27 = ssub.s32 %s19, %s26
      %p28 = scmp.eq.s32.totalorder %s27, 0
      %s30 = sadd.s32 %s29, 1
      %s31 = scalar_select %p28, %s29, %s30
      %p34 = pneg %p28
      %p35 = scmp.eq.s32.totalorder %s19, 3
      %p36 = por %p34, %p35
      %p37 = scmp.ne.s32.totalorder %s29, %s32
      %p38 = scmp.eq.s32.totalorder %s19, 0
      %p39 = por %p37, %p38
      %p40 = scmp.ne.s32.totalorder %s29, %s32
      %p41 = scmp.eq.s32.totalorder %s24, 3
      %p42 = por %p40, %p41
      %p43 = scmp.ne.s32.totalorder %s32, %s33
      %p44 = scmp.eq.s32.totalorder %s24, 0
      %p45 = por %p43, %p44
      %p46 = scmp.ne.s32.totalorder %s32, %s33
      %p47 = scmp.eq.s32.totalorder %s25, 3
      %p48 = por %p46, %p47
      %p50 = scmp.ne.s32.totalorder %s33, %s49
      %p51 = scmp.eq.s32.totalorder %s25, 0
      %p52 = por %p50, %p51
      %s53 = ssub.s32 %s19, %s26
      %p54 = scmp.eq.s32.totalorder %s53, 0
      %s56 = sadd.s32 %s55, 1
      %s57 = scalar_select %p54, %s55, %s56
      %p60 = pneg %p54
      %p61 = scmp.eq.s32.totalorder %s19, 3
      %p62 = por %p60, %p61
      %p63 = scmp.ne.s32.totalorder %s55, %s58
      %p64 = scmp.eq.s32.totalorder %s19, 0
      %p65 = por %p63, %p64
      %p66 = scmp.ne.s32.totalorder %s55, %s58
      %p67 = scmp.eq.s32.totalorder %s24, 3
      %p68 = por %p66, %p67
      %p69 = scmp.ne.s32.totalorder %s58, %s59
      %p70 = scmp.eq.s32.totalorder %s24, 0
      %p71 = por %p69, %p70
      %p72 = scmp.ne.s32.totalorder %s58, %s59
      %p73 = scmp.eq.s32.totalorder %s25, 3
      %p74 = por %p72, %p73
      %p76 = scmp.ne.s32.totalorder %s59, %s75
      %p77 = scmp.eq.s32.totalorder %s25, 0
      %p78 = por %p76, %p77
      %p79 = scmp.le.s32.totalorder 1, %s19
      %p80 = scmp.lt.s32.totalorder %s19, 5
      %p81 = pnand %p79, %p80
      %p82 = pneg %p81
      // Predicated region
      $region9: #{branch_1_fun.1} parent=5 // pred_check
        _
      $region10: #{branch_1_fun.1} parent=5 // pred_check_branch
        %84 = sbr.rel (%p81) target = $region12
      $region11: #{branch_1_fun.1} parent=5 // pred_region
        %s85 = ssub.s32 %s19, 1
      $region12: #{branch_1_fun.1} parent=5 // pred_fallthru
        _
      %p86 = scmp.lt.s32.totalorder %s19, 4
      // Predicated region
      $region13: #{branch_1_fun.1} parent=5 // pred_check
        %p87 = pneg %p86
      $region14: #{branch_1_fun.1} parent=5 // pred_check_branch
        %89 = sbr.rel (%p87) target = $region16
      $region15: #{branch_1_fun.1} parent=5 // pred_region
        // Predicated region
        $region17: #{branch_1_fun.1} parent=15 // pred_check
          %p90 = pneg %p39
        $region18: #{branch_1_fun.1} parent=15 // pred_check_branch
          %92 = sbr.rel (%p90) target = $region20
        $region19: #{branch_1_fun.1} parent=15 // pred_region
          %p93 = scmp.lt.s32.totalorder %s19, 3
          %s94 = scalar_select %p93, %s19, 3
          %s95 = smul.addr %s94, 2
          %s96 = smul.addr %s95, 8
          %s97 = scalar_lea.vmem %s1, %s96
        $region20: #{branch_1_fun.1} parent=15 // pred_fallthru
          _
      $region16: #{branch_1_fun.1} parent=5 // pred_fallthru
        _
      %p98 = scmp.le.s32.totalorder 1, %s19
      %p99 = scmp.lt.s32.totalorder %s19, 5
      %p100 = pnand %p98, %p99
      %p101 = pneg %p100
      // Predicated region
      $region21: #{branch_1_fun.1} parent=5 // pred_check
        _
      $region22: #{branch_1_fun.1} parent=5 // pred_check_branch
        %103 = sbr.rel (%p100) target = $region24
      $region23: #{branch_1_fun.1} parent=5 // pred_region
        %s104 = ssub.s32 %s19, 1
        %p105 = scmp.lt.s32.totalorder %s24, 3
        %s106 = scalar_select %p105, %s24, 3
        %s107 = smul.addr %s106, 2
        %s108 = smul.addr %s107, 8
        %s109 = scalar_lea.vmem %s1, %s108
        %p110 = pneg %p45
        %p111 = pneg %p42
        %p112 = pneg %p71
        %p113 = pneg %p68
        %s114 = sand.u32 %s58, 1
        %s115 = scalar_lea.sflag [#allocation6], %s114
        %s116 = sand.u32 %s58, 1
        %s117 = smul.addr %s116, 16
        %s118 = scalar_lea.vmem [#allocation5], %s117
        %p119 = scmp.lt.s32.totalorder %s24, 3
        %s120 = scalar_select %p119, %s24, 3
        %s121 = smul.addr %s120, 2
        %s122 = smul.addr %s121, 8
        %s123 = scalar_lea.vmem %s1, %s122
        %v124 = vld [vmem:[%s123] sm:$0xff]
        %v125 = vld [vmem:[%s123 + $0x8] sm:$0xff]
        %vm126 = vcmask 130048
        %127 = vst.msk [vmem:[%s118] sm:$0xff] %vm126, %v124
        %128 = vst.msk [vmem:[%s118 + $0x8] sm:$0xff] %vm126, %v125
        %vm129 = vcmask 36864
        %130 = vst.msk [vmem:[#allocation2] sm:$0x1f] %vm129, %v124
        %132 = vrot.lane.b32.xlu0 %v124, 123
        %v133 = vpop.permute.xlu0 %132
        %s135 = scalar_lea.vmem [#allocation2], 8
        %136 = vst.msk [vmem:[%s135] sm:$0x1f] %vm129, %v133
        %137 = vrot.lane.b32.xlu0 %v124, 118
        %v138 = vpop.permute.xlu0 %137
        %s140 = scalar_lea.vmem [#allocation2], 16
        %141 = vst.msk [vmem:[%s140] sm:$0x1f] %vm129, %v138
        %s142 = scalar_lea.vmem [#allocation2], 24
        %vm143 = vcmask 39941
        %144 = vst.msk [vmem:[%s142 - $0x5] sm:$0xe0] %vm143, %v124
        %vm145 = vcmask 33792
        %146 = vst.msk [vmem:[%s142 + $0x3] sm:$0x3] %vm145, %v125
        %148 = vrot.lane.b32.xlu0 %v125, 123
        %v149 = vpop.permute.xlu0 %148
        %s151 = scalar_lea.vmem [#allocation2], 32
        %152 = vst.msk [vmem:[%s151 - $0x5] sm:$0xe0] %vm143, %v133
        %153 = vst.msk [vmem:[%s151 + $0x3] sm:$0x3] %vm145, %v149
        %154 = vrot.lane.b32.xlu0 %v125, 118
        %v155 = vpop.permute.xlu0 %154
        %s157 = scalar_lea.vmem [#allocation2], 40
        %158 = vst.msk [vmem:[%s157 - $0x5] sm:$0xe0] %vm143, %v138
        %159 = vst.msk [vmem:[%s157 + $0x3] sm:$0x3] %vm145, %v155
        %s160 = scalar_lea.vmem [#allocation2], 48
        %vm161 = vcmask 38914
        %162 = vst.msk [vmem:[%s160 - $0x2] sm:$0x7c] %vm161, %v125
        %s163 = scalar_lea.vmem [#allocation2], 56
        %164 = vst.msk [vmem:[%s163 - $0x2] sm:$0x7c] %vm161, %v149
        %s165 = scalar_lea.vmem [#allocation2], 64
        %166 = vst.msk [vmem:[%s165 - $0x2] sm:$0x7c] %vm161, %v155
        %s167 = sld [smem:[#allocation4]]
        %s168 = smul.u32 %s167, 8
        %s169 = scalar_lea.vmem [#allocation2], %s168
        %v170 = vld [vmem:[%s169] sm:$0x1f]
        %171 = vst.msk [vmem:[%s118] sm:$0x1f] %vm129, %v170
        %s172 = sld [smem:[#allocation4 + $0x1]]
        %s173 = smul.u32 %s172, 8
        %s174 = scalar_lea.vmem [#allocation2], %s173
        %v175 = vld [vmem:[%s174] sm:$0x1f]
        %177 = vrot.lane.b32.xlu0 %v175, 5
        %v178 = vpop.permute.xlu0 %177
        %vm180 = vcmask 77864
        %181 = vst.msk [vmem:[%s118] sm:$0x1f] %vm180, %v178
        %s182 = sld [smem:[#allocation4 + $0x2]]
        %s183 = smul.u32 %s182, 8
        %s184 = scalar_lea.vmem [#allocation2], %s183
        %v185 = vld [vmem:[%s184] sm:$0x1f]
        %187 = vrot.lane.b32.xlu0 %v185, 10
        %v188 = vpop.permute.xlu0 %187
        %vm190 = vcmask 118864
        %191 = vst.msk [vmem:[%s118] sm:$0x1f] %vm190, %v188
        %s192 = sld [smem:[#allocation4 + $0x3]]
        %s193 = smul.u32 %s192, 8
        %s194 = scalar_lea.vmem [#allocation2], %s193
        %v195 = vld [vmem:[%s194] sm:$0x1f]
        %196 = vst.msk [vmem:[%s118 + $0x5] sm:$0x1f] %vm129, %v195
        %s197 = sld [smem:[#allocation4 + $0x4]]
        %s198 = smul.u32 %s197, 8
        %s199 = scalar_lea.vmem [#allocation2], %s198
        %v200 = vld [vmem:[%s199] sm:$0x1f]
        %202 = vrot.lane.b32.xlu0 %v200, 5
        %v203 = vpop.permute.xlu0 %202
        %205 = vst.msk [vmem:[%s118 + $0x5] sm:$0x1f] %vm180, %v203
        %s206 = sld [smem:[#allocation4 + $0x5]]
        %s207 = smul.u32 %s206, 8
        %s208 = scalar_lea.vmem [#allocation2], %s207
        %v209 = vld [vmem:[%s208] sm:$0x1f]
        %211 = vrot.lane.b32.xlu0 %v209, 10
        %v212 = vpop.permute.xlu0 %211
        %214 = vst.msk [vmem:[%s118 + $0x5] sm:$0x1f] %vm190, %v212
        %s215 = sld [smem:[#allocation4 + $0x6]]
        %s216 = smul.u32 %s215, 8
        %s217 = scalar_lea.vmem [#allocation2], %s216
        %v218 = vld [vmem:[%s217] sm:$0x1f]
        %219 = vst.msk [vmem:[%s118 + $0xa] sm:$0x1f] %vm129, %v218
        %s220 = sld [smem:[#allocation4 + $0x7]]
        %s221 = smul.u32 %s220, 8
        %s222 = scalar_lea.vmem [#allocation2], %s221
        %v223 = vld [vmem:[%s222] sm:$0x1f]
        %225 = vrot.lane.b32.xlu0 %v223, 5
        %v226 = vpop.permute.xlu0 %225
        %228 = vst.msk [vmem:[%s118 + $0xa] sm:$0x1f] %vm180, %v226
        %s229 = sld [smem:[#allocation4 + $0x8]]
        %s230 = smul.u32 %s229, 8
        %s231 = scalar_lea.vmem [#allocation2], %s230
        %v232 = vld [vmem:[%s231] sm:$0x1f]
        %234 = vrot.lane.b32.xlu0 %v232, 10
        %v235 = vpop.permute.xlu0 %234
        %237 = vst.msk [vmem:[%s118 + $0xa] sm:$0x1f] %vm190, %v235
        %s238 = sand.u32 %s58, 1
        %s239 = scalar_lea.sflag [#allocation6], %s238
        %s240 = sand.u32 %s58, 1
        %s241 = smul.addr %s240, 16
        %s242 = scalar_lea.vmem [#allocation5], %s241
        // Predicated region
        $region25: #{branch_1_fun.1} parent=23 // pred_check
          %p243 = pneg %p68
        $region26: #{branch_1_fun.1} parent=23 // pred_check_branch
          %245 = sbr.rel (%p243) target = $region28
        $region27: #{branch_1_fun.1} parent=23 // pred_region
          %247 = vsyncadd %s239, 0
          %s248 = smul.addr %s24, 2
          %s249 = smul.addr %s248, 8
          %s250 = scalar_lea.hbm %s2, %s249
          %s251 = sshll.u32 %s242, 4
          %s252 = int_to_ptr.vmem [resolvable:$true] %s251
          %s253 = sshll.u32 %s250, 4
          %s254 = int_to_ptr.hbm [resolvable:$true] %s253
          %259 = dma.vmem_to_hbm [thread:$0]  %s252, 256, %s254, %s239, 128, 128, 8
        $region28: #{branch_1_fun.1} parent=23 // pred_fallthru
          _
      $region24: #{branch_1_fun.1} parent=5 // pred_fallthru
        _
      %p260 = scmp.le.s32.totalorder 2, %s19
      // Predicated region
      $region29: #{branch_1_fun.1} parent=5 // pred_check
        %p261 = pneg %p260
      $region30: #{branch_1_fun.1} parent=5 // pred_check_branch
        %263 = sbr.rel (%p261) target = $region32
      $region31: #{branch_1_fun.1} parent=5 // pred_region
        %s264 = ssub.s32 %s19, 2
        // Predicated region
        $region33: #{branch_1_fun.1} parent=31 // pred_check
          %p265 = pneg %p74
        $region34: #{branch_1_fun.1} parent=31 // pred_check_branch
          %267 = sbr.rel (%p265) target = $region36
        $region35: #{branch_1_fun.1} parent=31 // pred_region
          %s268 = sand.u32 %s59, 1
          %s269 = scalar_lea.sflag [#allocation6], %s268
          %s270 = sand.u32 %s59, 1
          %s271 = smul.addr %s270, 16
          %s272 = scalar_lea.vmem [#allocation5], %s271
          %274 = dma.done %s269, 256
        $region36: #{branch_1_fun.1} parent=31 // pred_fallthru
          _
      $region32: #{branch_1_fun.1} parent=5 // pred_fallthru
        _
    $region6: #{branch_1_fun.1} parent=1 // loop_footer
      %s23 = sadd.s32 1, %s19
    $region7: #{branch_1_fun.1} parent=1 // loop_footer_branch
      %18 = sbr.rel target = $region3
    $region8: #{branch_1_fun.1} parent=1 // loop_exit
      _
    %275 = vsyncpa [#allocation6], 1
    %s276 = scalar_lea.sflag [#allocation6], 1
    %277 = vsyncpa %s276, 1

</llo_original>
